<compile_context>
chip_gen: v5e
topology: v5e:2x2
jax: 0.10.0
libtpu: 0.0.40
codegen_flags: <defaults>
</compile_context>

<pallas_src>
import numpy as np
import jax
import jax.numpy as jnp
from jax.experimental import pallas as pl
from jax.experimental.pallas import tpu as pltpu

F_IN = 1       # Linear in_features
F_V = 2        # value Linear out_features
DROPOUT_P = 0.5


def attn_kernel(params_ref, x1_ref, x2_ref, mask_ref, o_ref):
    # params (SMEM): [wq*rs, bq*rs, wk, bk, wv0, wv1, bv0, bv1]
    wq = params_ref[0]     # 1/inv_scale already folded in
    bq = params_ref[1]
    wk = params_ref[2]
    bk = params_ref[3]
    wv0 = params_ref[4]
    wv1 = params_ref[5]
    bv0 = params_ref[6]
    bv1 = params_ref[7]

    x1 = x1_ref[...]                     # (BC, S, 1)  query index on sublanes
    x2 = x2_ref[...]                     # (BC, 1, S)  key index on lanes

    q = x1 * wq + bq                     # (BC, S, 1)  (scale pre-folded)
    k = x2 * wk + bk                     # (BC, 1, S)

    # outer product per batch == q @ k^T (inner dim is 1), already /inv_scale
    s = q * k                            # (BC, S, S)

    # softmax over the key axis (lanes)
    m = jnp.max(s, axis=-1, keepdims=True)
    e = jnp.exp(s - m)
    denom = jnp.sum(e, axis=-1, keepdims=True)

    # inverted dropout: mask holds {0, 1/(1-p)} precomputed
    p = (e / denom) * mask_ref[...]      # (BC, S, S)

    # algebraic fold of  p @ v  with  v = x2*wv + bv :
    #   o[:, :, c] = (sum_j p*x2) * wv[c] + (sum_j p) * bv[c]
    rowdot = jnp.sum(p * x2, axis=-1)    # (BC, S)
    rowsum = jnp.sum(p, axis=-1)         # (BC, S)

    o_ref[0] = rowdot * wv0 + rowsum * bv0   # channel 0 plane (BC, S)
    o_ref[1] = rowdot * wv1 + rowsum * bv1   # channel 1 plane (BC, S)


def model_forward(x1, x2, params, dropout_key):
    B, C, S, f = x1.shape
    assert f == F_IN and x2.shape == x1.shape
    BC = B * C

    x1r = x1.reshape(BC, S, 1).astype(jnp.float32)   # query index -> sublanes
    x2c = x2.reshape(BC, 1, S).astype(jnp.float32)   # key index   -> lanes

    # inv_scale_factor = sqrt(q.numel()) = sqrt(B*C*S*1); fold into q proj.
    inv_scale = float(np.sqrt(BC * S * F_IN))
    rs = 1.0 / inv_scale
    wq, bq, wk, bk, wv0, wv1, bv0, bv1 = (params[i] for i in range(8))
    packed = jnp.stack(
        [wq * rs, bq * rs, wk, bk, wv0, wv1, bv0, bv1]).astype(jnp.float32)

    # dropout keep-mask, pre-scaled by 1/(1-p)
    keep = jax.random.bernoulli(dropout_key, 1.0 - DROPOUT_P, (BC, S, S))
    mask = keep.astype(jnp.float32) * (1.0 / (1.0 - DROPOUT_P))

    out = pl.pallas_call(
        attn_kernel,
        out_shape=jax.ShapeDtypeStruct((F_V, BC, S), jnp.float32),
        in_specs=[
            pl.BlockSpec(memory_space=pltpu.MemorySpace.SMEM),   # params
            pl.BlockSpec(memory_space=pltpu.MemorySpace.VMEM),   # x1 (BC,S,1)
            pl.BlockSpec(memory_space=pltpu.MemorySpace.VMEM),   # x2 (BC,1,S)
            pl.BlockSpec(memory_space=pltpu.MemorySpace.VMEM),   # dropout mask
        ],
        out_specs=pl.BlockSpec(memory_space=pltpu.MemorySpace.VMEM),
    )(packed, x1r, x2c, mask)

    # (F_V, BC, S) -> (B, C, S, F_V)
    return jnp.transpose(out, (1, 2, 0)).reshape(B, C, S, F_V)


if __name__ == "__main__":
    key = jax.random.PRNGKey(0)
    k1, k2, kd = jax.random.split(key, 3)

    B, C, S = 2, 3, 8
    x1 = jax.random.normal(k1, (B, C, S, F_IN), dtype=jnp.float32)
    x2 = jax.random.normal(k2, (B, C, S, F_IN), dtype=jnp.float32)

    # Deterministic "Linear" parameters:
    #   query: w=0.5, b=0.1 ; key: w=-0.3, b=0.2 ; value: w=[0.7,-0.4], b=[0.05,-0.05]
    params = jnp.array([0.5, 0.1, -0.3, 0.2, 0.7, -0.4, 0.05, -0.05],
                       dtype=jnp.float32)

    out = model_forward(x1, x2, params, kd)
    jax.block_until_ready(out)
    assert out.shape == (B, C, S, F_V)
    assert bool(jnp.all(jnp.isfinite(out)))

    # pure-JAX reference (same dropout mask) for a correctness check
    BC = B * C
    wq, bq, wk, bk, wv0, wv1, bv0, bv1 = (float(params[i]) for i in range(8))
    x1f = x1.reshape(BC, S)
    x2f = x2.reshape(BC, S)
    q = x1f * wq + bq
    k = x2f * wk + bk
    v = jnp.stack([x2f * wv0 + bv0, x2f * wv1 + bv1], axis=-1)        # (BC,S,2)
    qk = q[:, :, None] * k[:, None, :] / np.sqrt(BC * S * F_IN)
    sm = jax.nn.softmax(qk, axis=-1)
    keep = jax.random.bernoulli(kd, 1.0 - DROPOUT_P, (BC, S, S)).astype(jnp.float32)
    pd = sm * keep * (1.0 / (1.0 - DROPOUT_P))
    ref = jnp.einsum('bij,bjc->bic', pd, v).reshape(B, C, S, F_V)
    assert bool(jnp.allclose(out, ref, atol=1e-5, rtol=1e-5))

    print("KERNEL_OK")
</pallas_src>

<mosaic_0001>
module attributes {stable_mosaic.version = 11 : i64} {
  func.func @attn_kernel(%arg0: memref<8xf32, #tpu.memory_space<smem>>, %arg1: memref<6x8x1xf32, #tpu.memory_space<vmem>>, %arg2: memref<6x1x8xf32, #tpu.memory_space<vmem>>, %arg3: memref<6x8x8xf32, #tpu.memory_space<vmem>>, %arg4: memref<2x6x8xf32, #tpu.memory_space<vmem>>) attributes {dimension_semantics = [], scalar_prefetch = 0 : i64, scratch_operands = 0 : i64, tpu.core_type = #tpu.core_type<tc>} {
    %c0 = arith.constant 0 : index
    %0 = memref.load %arg0[%c0] : memref<8xf32, #tpu.memory_space<smem>>
    %c1 = arith.constant 1 : index
    %1 = memref.load %arg0[%c1] : memref<8xf32, #tpu.memory_space<smem>>
    %c2 = arith.constant 2 : index
    %2 = memref.load %arg0[%c2] : memref<8xf32, #tpu.memory_space<smem>>
    %c3 = arith.constant 3 : index
    %3 = memref.load %arg0[%c3] : memref<8xf32, #tpu.memory_space<smem>>
    %c4 = arith.constant 4 : index
    %4 = memref.load %arg0[%c4] : memref<8xf32, #tpu.memory_space<smem>>
    %c5 = arith.constant 5 : index
    %5 = memref.load %arg0[%c5] : memref<8xf32, #tpu.memory_space<smem>>
    %c6 = arith.constant 6 : index
    %6 = memref.load %arg0[%c6] : memref<8xf32, #tpu.memory_space<smem>>
    %c7 = arith.constant 7 : index
    %7 = memref.load %arg0[%c7] : memref<8xf32, #tpu.memory_space<smem>>
    %c0_0 = arith.constant 0 : index
    %c0_1 = arith.constant 0 : index
    %c0_2 = arith.constant 0 : index
    %8 = vector.load %arg1[%c0_0, %c0_1, %c0_2] : memref<6x8x1xf32, #tpu.memory_space<vmem>>, vector<6x8x1xf32>
    %c0_3 = arith.constant 0 : index
    %c0_4 = arith.constant 0 : index
    %c0_5 = arith.constant 0 : index
    %9 = vector.load %arg2[%c0_3, %c0_4, %c0_5] : memref<6x1x8xf32, #tpu.memory_space<vmem>>, vector<6x1x8xf32>
    %10 = vector.broadcast %0 : f32 to vector<6x8x1xf32>
    %11 = arith.mulf %8, %10 : vector<6x8x1xf32>
    %12 = vector.broadcast %1 : f32 to vector<6x8x1xf32>
    %13 = arith.addf %11, %12 : vector<6x8x1xf32>
    %14 = vector.broadcast %2 : f32 to vector<6x1x8xf32>
    %15 = arith.mulf %9, %14 : vector<6x1x8xf32>
    %16 = vector.broadcast %3 : f32 to vector<6x1x8xf32>
    %17 = arith.addf %15, %16 : vector<6x1x8xf32>
    %18 = vector.broadcast %13 : vector<6x8x1xf32> to vector<6x8x8xf32>
    %19 = vector.broadcast %17 : vector<6x1x8xf32> to vector<6x8x8xf32>
    %20 = arith.mulf %18, %19 : vector<6x8x8xf32>
    %cst = arith.constant dense<0xFF800000> : vector<6x8xf32>
    %21 = vector.multi_reduction <maximumf>, %20, %cst [2] : vector<6x8x8xf32> to vector<6x8xf32>
    %22 = vector.shape_cast %21 : vector<6x8xf32> to vector<6x8x1xf32>
    %23 = vector.broadcast %22 : vector<6x8x1xf32> to vector<6x8x8xf32>
    %24 = arith.subf %20, %23 : vector<6x8x8xf32>
    %25 = math.exp %24 : vector<6x8x8xf32>
    %cst_6 = arith.constant dense<0.000000e+00> : vector<6x8xf32>
    %26 = vector.multi_reduction <add>, %25, %cst_6 [2] : vector<6x8x8xf32> to vector<6x8xf32>
    %27 = vector.shape_cast %26 : vector<6x8xf32> to vector<6x8x1xf32>
    %28 = vector.broadcast %27 : vector<6x8x1xf32> to vector<6x8x8xf32>
    %29 = arith.divf %25, %28 : vector<6x8x8xf32>
    %c0_7 = arith.constant 0 : index
    %c0_8 = arith.constant 0 : index
    %c0_9 = arith.constant 0 : index
    %30 = vector.load %arg3[%c0_7, %c0_8, %c0_9] : memref<6x8x8xf32, #tpu.memory_space<vmem>>, vector<6x8x8xf32>
    %31 = arith.mulf %29, %30 : vector<6x8x8xf32>
    %32 = vector.broadcast %9 : vector<6x1x8xf32> to vector<6x8x8xf32>
    %33 = arith.mulf %31, %32 : vector<6x8x8xf32>
    %cst_10 = arith.constant dense<0.000000e+00> : vector<6x8xf32>
    %34 = vector.multi_reduction <add>, %33, %cst_10 [2] : vector<6x8x8xf32> to vector<6x8xf32>
    %cst_11 = arith.constant dense<0.000000e+00> : vector<6x8xf32>
    %35 = vector.multi_reduction <add>, %31, %cst_11 [2] : vector<6x8x8xf32> to vector<6x8xf32>
    %36 = vector.broadcast %4 : f32 to vector<6x8xf32>
    %37 = arith.mulf %34, %36 : vector<6x8xf32>
    %38 = vector.broadcast %6 : f32 to vector<6x8xf32>
    %39 = arith.mulf %35, %38 : vector<6x8xf32>
    %40 = arith.addf %37, %39 : vector<6x8xf32>
    %c0_12 = arith.constant 0 : index
    %c0_13 = arith.constant 0 : index
    %c0_14 = arith.constant 0 : index
    %41 = vector.load %arg4[%c0_12, %c0_13, %c0_14] : memref<2x6x8xf32, #tpu.memory_space<vmem>>, vector<1x6x8xf32>
    %42 = vector.shape_cast %41 : vector<1x6x8xf32> to vector<6x8xf32>
    %43 = vector.shape_cast %40 : vector<6x8xf32> to vector<1x6x8xf32>
    tpu.vector_store %arg4[%c0_12, %c0_13, %c0_14], %43 {strides = array<i32>} : memref<2x6x8xf32, #tpu.memory_space<vmem>>, vector<1x6x8xf32>,
    %44 = vector.broadcast %5 : f32 to vector<6x8xf32>
    %45 = arith.mulf %34, %44 : vector<6x8xf32>
    %46 = vector.broadcast %7 : f32 to vector<6x8xf32>
    %47 = arith.mulf %35, %46 : vector<6x8xf32>
    %48 = arith.addf %45, %47 : vector<6x8xf32>
    %c1_15 = arith.constant 1 : index
    %c0_16 = arith.constant 0 : index
    %c0_17 = arith.constant 0 : index
    %49 = vector.load %arg4[%c1_15, %c0_16, %c0_17] : memref<2x6x8xf32, #tpu.memory_space<vmem>>, vector<1x6x8xf32>
    %50 = vector.shape_cast %49 : vector<1x6x8xf32> to vector<6x8xf32>
    %51 = vector.shape_cast %48 : vector<6x8xf32> to vector<1x6x8xf32>
    tpu.vector_store %arg4[%c1_15, %c0_16, %c0_17], %51 {strides = array<i32>} : memref<2x6x8xf32, #tpu.memory_space<vmem>>, vector<1x6x8xf32>,
    return
  }
}

</mosaic_0001>

<llo_original>
// kernel: tpu_custom_call.1
$region0: #{tpu_custom_call.1}
  #allocation0 [shape = 'u32[]', space=smem, size = 0x4, offset = 0x4, fixed_abs, tag = 'smem constant byte address 0x4 - core index']
  #allocation1 [shape = 'u32[72,128]{1,0:T(1,128)}', space=vmem, size = 0x9000, scoped, tag = 'internal scratch']
  %s0 = inlined_call_operand.vmem [shape: f32[8], index: 0, kind: input, shape index: {}]
  %s1 = inlined_call_operand.vmem [shape: f32[6,8,1], index: 1, kind: input, shape index: {}]
  %s2 = inlined_call_operand.vmem [shape: f32[6,1,8], index: 2, kind: input, shape index: {}]
  %s3 = inlined_call_operand.vmem [shape: f32[6,8,8], index: 3, kind: input, shape index: {}]
  %s4 = inlined_call_operand.vmem [shape: f32[2,6,8], index: 4, kind: output, shape index: {}]
  %s5 = sld [smem:[#allocation0]]
  $region30: #{tpu_custom_call.1} parent=0
    _
  %s7 = ssub.s32 1, %s5
  %s8 = scalar_select 0, %s7, %s5
  $region1: #{tpu_custom_call.1} parent=0
    #allocation2 [shape = 'u8[512]{0}', space=smem, size = 0x200, scoped, tag = 'input window, operand 0, single buffered']
    #allocation3 [shape = 's32[1]{0}', space=sflag, size = 0x4, scoped, tag = 'scoped memory for tpu_custom_call.1']
    %9 = vsyncpa [#allocation3], 0
    // Predicated region
    $region2: #{tpu_custom_call.1} parent=1 // pred_check
      _
    $region3: #{tpu_custom_call.1} parent=1 // pred_check_branch
      %11 = sbr.rel (0) target = $region5
    $region4: #{tpu_custom_call.1} parent=1 // pred_region
      %13 = vsyncadd [#allocation3], 0
      %s15 = sshll.u32 %s0, 4
      %s16 = int_to_ptr.vmem [resolvable:$true] %s15
      %18 = dma.vmem_to_smem %s16, 16, [#allocation2], [#allocation3]
    $region5: #{tpu_custom_call.1} parent=1 // pred_fallthru
      _
    // Predicated region
    $region6: #{tpu_custom_call.1} parent=1 // pred_check
      _
    $region7: #{tpu_custom_call.1} parent=1 // pred_check_branch
      %20 = sbr.rel (0) target = $region9
    $region8: #{tpu_custom_call.1} parent=1 // pred_region
      _
    $region9: #{tpu_custom_call.1} parent=1 // pred_fallthru
      _
    // Predicated region
    $region10: #{tpu_custom_call.1} parent=1 // pred_check
      _
    $region11: #{tpu_custom_call.1} parent=1 // pred_check_branch
      %22 = sbr.rel (0) target = $region13
    $region12: #{tpu_custom_call.1} parent=1 // pred_region
      _
    $region13: #{tpu_custom_call.1} parent=1 // pred_fallthru
      _
    // Predicated region
    $region14: #{tpu_custom_call.1} parent=1 // pred_check
      _
    $region15: #{tpu_custom_call.1} parent=1 // pred_check_branch
      %24 = sbr.rel (0) target = $region17
    $region16: #{tpu_custom_call.1} parent=1 // pred_region
      _
    $region17: #{tpu_custom_call.1} parent=1 // pred_fallthru
      _
    // Predicated region
    $region18: #{tpu_custom_call.1} parent=1 // pred_check
      _
    $region19: #{tpu_custom_call.1} parent=1 // pred_check_branch
      %26 = sbr.rel (0) target = $region21
    $region20: #{tpu_custom_call.1} parent=1 // pred_region
      %28 = dma.done [#allocation3], 16
    $region21: #{tpu_custom_call.1} parent=1 // pred_fallthru
      _
    %29 = sfence
    %s30 = sld [smem:[#allocation2]]
    %s31 = sld [smem:[#allocation2 + $0x1]]
    %s32 = sld [smem:[#allocation2 + $0x2]]
    %s33 = sld [smem:[#allocation2 + $0x3]]
    %s34 = sld [smem:[#allocation2 + $0x4]]
    %s35 = sld [smem:[#allocation2 + $0x5]]
    %s36 = sld [smem:[#allocation2 + $0x6]]
    %s37 = sld [smem:[#allocation2 + $0x7]]
    %v38 = vld [vmem:[%s1] sm:$0xff]
    %v39 = vld [vmem:[%s1 + $0x8] sm:$0xff]
    %v40 = vld [vmem:[%s1 + $0x10] sm:$0xff]
    %v41 = vld [vmem:[%s1 + $0x18] sm:$0xff]
    %v42 = vld [vmem:[%s1 + $0x20] sm:$0xff]
    %v43 = vld [vmem:[%s1 + $0x28] sm:$0xff]
    %v44 = vld [vmem:[%s2] sm:$0x1]
    %v45 = vld [vmem:[%s2 + $0x1] sm:$0x1]
    %v46 = vld [vmem:[%s2 + $0x2] sm:$0x1]
    %v47 = vld [vmem:[%s2 + $0x3] sm:$0x1]
    %v48 = vld [vmem:[%s2 + $0x4] sm:$0x1]
    %v49 = vld [vmem:[%s2 + $0x5] sm:$0x1]
    %v50 = vstv %s30
    %v51 = vmul.f32 %v38, %v50
    %v52 = vmul.f32 %v39, %v50
    %v53 = vmul.f32 %v40, %v50
    %v54 = vmul.f32 %v41, %v50
    %v55 = vmul.f32 %v42, %v50
    %v56 = vmul.f32 %v43, %v50
    %v57 = vstv %s31
    %v58 = vadd.f32 %v51, %v57
    %v59 = vadd.f32 %v52, %v57
    %v60 = vadd.f32 %v53, %v57
    %v61 = vadd.f32 %v54, %v57
    %v62 = vadd.f32 %v55, %v57
    %v63 = vadd.f32 %v56, %v57
    %v64 = vstv %s32
    %v65 = vmul.f32 %v44, %v64
    %v66 = vmul.f32 %v45, %v64
    %v67 = vmul.f32 %v46, %v64
    %v68 = vmul.f32 %v47, %v64
    %v69 = vmul.f32 %v48, %v64
    %v70 = vmul.f32 %v49, %v64
    %v71 = vstv %s33
    %v72 = vadd.f32 %v65, %v71
    %v73 = vadd.f32 %v66, %v71
    %v74 = vadd.f32 %v67, %v71
    %v75 = vadd.f32 %v68, %v71
    %v76 = vadd.f32 %v69, %v71
    %v77 = vadd.f32 %v70, %v71
    %79 = vset.pattern.permute.xlu0 0
    %80 = vperm.xlu0 %79, %v58
    %v81 = vpop.permute.xlu0 %80
    %84 = vset.pattern.permute.xlu0 0
    %85 = vperm.xlu0 %84, %v59
    %v86 = vpop.permute.xlu0 %85
    %89 = vset.pattern.permute.xlu0 0
    %90 = vperm.xlu0 %89, %v60
    %v91 = vpop.permute.xlu0 %90
    %94 = vset.pattern.permute.xlu0 0
    %95 = vperm.xlu0 %94, %v61
    %v96 = vpop.permute.xlu0 %95
    %99 = vset.pattern.permute.xlu0 0
    %100 = vperm.xlu0 %99, %v62
    %v101 = vpop.permute.xlu0 %100
    %104 = vset.pattern.permute.xlu0 0
    %105 = vperm.xlu0 %104, %v63
    %v106 = vpop.permute.xlu0 %105
    %v114 = vperm.slane %v72, 0
    %v115 = vperm.slane %v73, 0
    %v116 = vperm.slane %v74, 0
    %v117 = vperm.slane %v75, 0
    %v118 = vperm.slane %v76, 0
    %v119 = vperm.slane %v77, 0
    %v126 = vmul.f32 %v81, %v114
    %v127 = vmul.f32 %v86, %v115
    %v128 = vmul.f32 %v91, %v116
    %v129 = vmul.f32 %v96, %v117
    %v130 = vmul.f32 %v101, %v118
    %v131 = vmul.f32 %v106, %v119
    %vm132 = vcmask 64512
    %v133 = vsel %vm132, %v126, -inf
    %134 = vmax.xlane.f32.xlu0 %v133
    %v135 = vpop.xlane.xlu0 %134
    %v136 = vsel %vm132, %v127, -inf
    %137 = vmax.xlane.f32.xlu0 %v136
    %v138 = vpop.xlane.xlu0 %137
    %v139 = vsel %vm132, %v128, -inf
    %140 = vmax.xlane.f32.xlu0 %v139
    %v141 = vpop.xlane.xlu0 %140
    %v142 = vsel %vm132, %v129, -inf
    %143 = vmax.xlane.f32.xlu0 %v142
    %v144 = vpop.xlane.xlu0 %143
    %v145 = vsel %vm132, %v130, -inf
    %146 = vmax.xlane.f32.xlu0 %v145
    %v147 = vpop.xlane.xlu0 %146
    %v148 = vsel %vm132, %v131, -inf
    %149 = vmax.xlane.f32.xlu0 %v148
    %v150 = vpop.xlane.xlu0 %149
    %v151 = vsub.f32 %v126, %v135
    %v152 = vsub.f32 %v127, %v138
    %v153 = vsub.f32 %v128, %v141
    %v154 = vsub.f32 %v129, %v144
    %v155 = vsub.f32 %v130, %v147
    %v156 = vsub.f32 %v131, %v150
    %v157 = vmul.f32 %v151, 1.442695
    %v158 = vpow.pop %v157
    %v159 = vmul.f32 %v152, 1.442695
    %v160 = vpow.pop %v159
    %v161 = vmul.f32 %v153, 1.442695
    %v162 = vpow.pop %v161
    %v163 = vmul.f32 %v154, 1.442695
    %v164 = vpow.pop %v163
    %v165 = vmul.f32 %v155, 1.442695
    %v166 = vpow.pop %v165
    %v167 = vmul.f32 %v156, 1.442695
    %v168 = vpow.pop %v167
    %v169 = vsel %vm132, %v158, 0.0
    %170 = vadd.xlane.f32.xlu0 %v169
    %v171 = vpop.xlane.xlu0 %170
    %v172 = vsel %vm132, %v160, 0.0
    %173 = vadd.xlane.f32.xlu0 %v172
    %v174 = vpop.xlane.xlu0 %173
    %v175 = vsel %vm132, %v162, 0.0
    %176 = vadd.xlane.f32.xlu0 %v175
    %v177 = vpop.xlane.xlu0 %176
    %v178 = vsel %vm132, %v164, 0.0
    %179 = vadd.xlane.f32.xlu0 %v178
    %v180 = vpop.xlane.xlu0 %179
    %v181 = vsel %vm132, %v166, 0.0
    %182 = vadd.xlane.f32.xlu0 %v181
    %v183 = vpop.xlane.xlu0 %182
    %v184 = vsel %vm132, %v168, 0.0
    %185 = vadd.xlane.f32.xlu0 %v184
    %v186 = vpop.xlane.xlu0 %185
    %v187 = vrcp.pop %v171
    %v188 = vmul.f32 %v171, %v187
    %v189 = vsub.f32 1.0, %v188
    %v190 = vmul.f32 %v187, %v189
    %v191 = vadd.f32 %v187, %v190
    %vm192 = vweird.f32 %v171
    %vm193 = vweird.f32 %v187
    %vm194 = vmor %vm192, %vm193
    %v195 = vsel %vm194, %v187, %v191
    %v196 = vand.u32 2147483647, %v171
    %vm197 = vcmp.eq.f32.partialorder %v196, 8.507059e+37
    %v198 = vand.u32 %v171, 2147483648
    %v199 = vor.u32 1.1754944e-38, %v198
    %v200 = vsel %vm197, %v199, %v195
    %v201 = vmul.f32 %v158, %v200
    %v202 = vrcp.pop %v174
    %v203 = vmul.f32 %v174, %v202
    %v204 = vsub.f32 1.0, %v203
    %v205 = vmul.f32 %v202, %v204
    %v206 = vadd.f32 %v202, %v205
    %vm207 = vweird.f32 %v174
    %vm208 = vweird.f32 %v202
    %vm209 = vmor %vm207, %vm208
    %v210 = vsel %vm209, %v202, %v206
    %v211 = vand.u32 2147483647, %v174
    %vm212 = vcmp.eq.f32.partialorder %v211, 8.507059e+37
    %v213 = vand.u32 %v174, 2147483648
    %v214 = vor.u32 1.1754944e-38, %v213
    %v215 = vsel %vm212, %v214, %v210
    %v216 = vmul.f32 %v160, %v215
    %v217 = vrcp.pop %v177
    %v218 = vmul.f32 %v177, %v217
    %v219 = vsub.f32 1.0, %v218
    %v220 = vmul.f32 %v217, %v219
    %v221 = vadd.f32 %v217, %v220
    %vm222 = vweird.f32 %v177
    %vm223 = vweird.f32 %v217
    %vm224 = vmor %vm222, %vm223
    %v225 = vsel %vm224, %v217, %v221
    %v226 = vand.u32 2147483647, %v177
    %vm227 = vcmp.eq.f32.partialorder %v226, 8.507059e+37
    %v228 = vand.u32 %v177, 2147483648
    %v229 = vor.u32 1.1754944e-38, %v228
    %v230 = vsel %vm227, %v229, %v225
    %v231 = vmul.f32 %v162, %v230
    %v232 = vrcp.pop %v180
    %v233 = vmul.f32 %v180, %v232
    %v234 = vsub.f32 1.0, %v233
    %v235 = vmul.f32 %v232, %v234
    %v236 = vadd.f32 %v232, %v235
    %vm237 = vweird.f32 %v180
    %vm238 = vweird.f32 %v232
    %vm239 = vmor %vm237, %vm238
    %v240 = vsel %vm239, %v232, %v236
    %v241 = vand.u32 2147483647, %v180
    %vm242 = vcmp.eq.f32.partialorder %v241, 8.507059e+37
    %v243 = vand.u32 %v180, 2147483648
    %v244 = vor.u32 1.1754944e-38, %v243
    %v245 = vsel %vm242, %v244, %v240
    %v246 = vmul.f32 %v164, %v245
    %v247 = vrcp.pop %v183
    %v248 = vmul.f32 %v183, %v247
    %v249 = vsub.f32 1.0, %v248
    %v250 = vmul.f32 %v247, %v249
    %v251 = vadd.f32 %v247, %v250
    %vm252 = vweird.f32 %v183
    %vm253 = vweird.f32 %v247
    %vm254 = vmor %vm252, %vm253
    %v255 = vsel %vm254, %v247, %v251
    %v256 = vand.u32 2147483647, %v183
    %vm257 = vcmp.eq.f32.partialorder %v256, 8.507059e+37
    %v258 = vand.u32 %v183, 2147483648
    %v259 = vor.u32 1.1754944e-38, %v258
    %v260 = vsel %vm257, %v259, %v255
    %v261 = vmul.f32 %v166, %v260
    %v262 = vrcp.pop %v186
    %v263 = vmul.f32 %v186, %v262
    %v264 = vsub.f32 1.0, %v263
    %v265 = vmul.f32 %v262, %v264
    %v266 = vadd.f32 %v262, %v265
    %vm267 = vweird.f32 %v186
    %vm268 = vweird.f32 %v262
    %vm269 = vmor %vm267, %vm268
    %v270 = vsel %vm269, %v262, %v266
    %v271 = vand.u32 2147483647, %v186
    %vm272 = vcmp.eq.f32.partialorder %v271, 8.507059e+37
    %v273 = vand.u32 %v186, 2147483648
    %v274 = vor.u32 1.1754944e-38, %v273
    %v275 = vsel %vm272, %v274, %v270
    %v276 = vmul.f32 %v168, %v275
    %v277 = vld [vmem:[%s3] sm:$0xff]
    %v278 = vld [vmem:[%s3 + $0x8] sm:$0xff]
    %v279 = vld [vmem:[%s3 + $0x10] sm:$0xff]
    %v280 = vld [vmem:[%s3 + $0x18] sm:$0xff]
    %v281 = vld [vmem:[%s3 + $0x20] sm:$0xff]
    %v282 = vld [vmem:[%s3 + $0x28] sm:$0xff]
    %v283 = vmul.f32 %v201, %v277
    %v284 = vmul.f32 %v216, %v278
    %v285 = vmul.f32 %v231, %v279
    %v286 = vmul.f32 %v246, %v280
    %v287 = vmul.f32 %v261, %v281
    %v288 = vmul.f32 %v276, %v282
    %v295 = vperm.slane %v44, 0
    %v296 = vperm.slane %v45, 0
    %v297 = vperm.slane %v46, 0
    %v298 = vperm.slane %v47, 0
    %v299 = vperm.slane %v48, 0
    %v300 = vperm.slane %v49, 0
    %v307 = vmul.f32 %v283, %v295
    %v308 = vmul.f32 %v284, %v296
    %v309 = vmul.f32 %v285, %v297
    %v310 = vmul.f32 %v286, %v298
    %v311 = vmul.f32 %v287, %v299
    %v312 = vmul.f32 %v288, %v300
    %v313 = vsel %vm132, %v307, 0.0
    %314 = vadd.xlane.f32.xlu0 %v313
    %v315 = vpop.xlane.xlu0 %314
    %v316 = vsel %vm132, %v308, 0.0
    %317 = vadd.xlane.f32.xlu0 %v316
    %v318 = vpop.xlane.xlu0 %317
    %v319 = vsel %vm132, %v309, 0.0
    %320 = vadd.xlane.f32.xlu0 %v319
    %v321 = vpop.xlane.xlu0 %320
    %v322 = vsel %vm132, %v310, 0.0
    %323 = vadd.xlane.f32.xlu0 %v322
    %v324 = vpop.xlane.xlu0 %323
    %v325 = vsel %vm132, %v311, 0.0
    %326 = vadd.xlane.f32.xlu0 %v325
    %v327 = vpop.xlane.xlu0 %326
    %v328 = vsel %vm132, %v312, 0.0
    %329 = vadd.xlane.f32.xlu0 %v328
    %v330 = vpop.xlane.xlu0 %329
    %v331 = vsel %vm132, %v283, 0.0
    %332 = vadd.xlane.f32.xlu0 %v331
    %v333 = vpop.xlane.xlu0 %332
    %v334 = vsel %vm132, %v284, 0.0
    %335 = vadd.xlane.f32.xlu0 %v334
    %v336 = vpop.xlane.xlu0 %335
    %v337 = vsel %vm132, %v285, 0.0
    %338 = vadd.xlane.f32.xlu0 %v337
    %v339 = vpop.xlane.xlu0 %338
    %v340 = vsel %vm132, %v286, 0.0
    %341 = vadd.xlane.f32.xlu0 %v340
    %v342 = vpop.xlane.xlu0 %341
    %v343 = vsel %vm132, %v287, 0.0
    %344 = vadd.xlane.f32.xlu0 %v343
    %v345 = vpop.xlane.xlu0 %344
    %v346 = vsel %vm132, %v288, 0.0
    %347 = vadd.xlane.f32.xlu0 %v346
    %v348 = vpop.xlane.xlu0 %347
    %v349 = vstv %s34
    %v350 = vmul.f32 %v315, %v349
    %v351 = vmul.f32 %v318, %v349
    %v352 = vmul.f32 %v321, %v349
    %v353 = vmul.f32 %v324, %v349
    %v354 = vmul.f32 %v327, %v349
    %v355 = vmul.f32 %v330, %v349
    %v356 = vstv %s36
    %v357 = vmul.f32 %v333, %v356
    %v358 = vmul.f32 %v336, %v356
    %v359 = vmul.f32 %v339, %v356
    %v360 = vmul.f32 %v342, %v356
    %v361 = vmul.f32 %v345, %v356
    %v362 = vmul.f32 %v348, %v356
    %v363 = vadd.f32 %v350, %v357
    %v364 = vadd.f32 %v351, %v358
    %v365 = vadd.f32 %v352, %v359
    %v366 = vadd.f32 %v353, %v360
    %v367 = vadd.f32 %v354, %v361
    %v368 = vadd.f32 %v355, %v362
    %v375 = vlaneseq
    %v376 = vand.u32 %v375, 127
    %v377 = vperm.slane %v363, %v376
    %v378 = vperm.slane %v364, %v376
    %v379 = vperm.slane %v365, %v376
    %v380 = vperm.slane %v366, %v376
    %v381 = vperm.slane %v367, %v376
    %v382 = vperm.slane %v368, %v376
    %vm383 = vcmask 1041409
    %v384 = vsel %vm383, %v378, %v377
    %vm385 = vcmask 1042434
    %v386 = vsel %vm385, %v379, %v384
    %vm387 = vcmask 1043459
    %v388 = vsel %vm387, %v380, %v386
    %vm389 = vcmask 1044484
    %v390 = vsel %vm389, %v381, %v388
    %vm391 = vcmask 1045509
    %v392 = vsel %vm391, %v382, %v390
    %vm394 = vcmask 62464
    %395 = vst.msk [vmem:[%s4] sm:$0x3f] %vm394, %v392
    %v396 = vstv %s35
    %v397 = vmul.f32 %v315, %v396
    %v398 = vmul.f32 %v318, %v396
    %v399 = vmul.f32 %v321, %v396
    %v400 = vmul.f32 %v324, %v396
    %v401 = vmul.f32 %v327, %v396
    %v402 = vmul.f32 %v330, %v396
    %v403 = vstv %s37
    %v404 = vmul.f32 %v333, %v403
    %v405 = vmul.f32 %v336, %v403
    %v406 = vmul.f32 %v339, %v403
    %v407 = vmul.f32 %v342, %v403
    %v408 = vmul.f32 %v345, %v403
    %v409 = vmul.f32 %v348, %v403
    %v410 = vadd.f32 %v397, %v404
    %v411 = vadd.f32 %v398, %v405
    %v412 = vadd.f32 %v399, %v406
    %v413 = vadd.f32 %v400, %v407
    %v414 = vadd.f32 %v401, %v408
    %v415 = vadd.f32 %v402, %v409
    %v422 = vperm.slane %v410, %v376
    %v423 = vperm.slane %v411, %v376
    %v424 = vperm.slane %v412, %v376
    %v425 = vperm.slane %v413, %v376
    %v426 = vperm.slane %v414, %v376
    %v427 = vperm.slane %v415, %v376
    %v428 = vsel %vm383, %v423, %v422
    %v429 = vsel %vm385, %v424, %v428
    %v430 = vsel %vm387, %v425, %v429
    %v431 = vsel %vm389, %v426, %v430
    %v432 = vsel %vm391, %v427, %v431
    %s434 = scalar_lea.vmem %s4, 8
    %435 = vst.msk [vmem:[%s434] sm:$0x3f] %vm394, %v432
    // Predicated region
    $region22: #{tpu_custom_call.1} parent=1 // pred_check
      _
    $region23: #{tpu_custom_call.1} parent=1 // pred_check_branch
      %437 = sbr.rel (0) target = $region25
    $region24: #{tpu_custom_call.1} parent=1 // pred_region
      _
    $region25: #{tpu_custom_call.1} parent=1 // pred_fallthru
      _
    // Predicated region
    $region26: #{tpu_custom_call.1} parent=1 // pred_check
      _
    $region27: #{tpu_custom_call.1} parent=1 // pred_check_branch
      %439 = sbr.rel (0) target = $region29
    $region28: #{tpu_custom_call.1} parent=1 // pred_region
      _
    $region29: #{tpu_custom_call.1} parent=1 // pred_fallthru
      _
    %440 = vsyncpa [#allocation3], 1

</llo_original>
